<compile_context>
chip_gen: v6e
topology: v6e:2x2x1
jax: 0.10.0
libtpu: 0.0.40
codegen_flags: <defaults>
</compile_context>

<pallas_src>
import functools
import math

import jax
import jax.numpy as jnp
from jax.experimental import pallas as pl
from jax.experimental.pallas import tpu as pltpu


def _round_up(x, m):
    return ((x + m - 1) // m) * m


def _finish_softmax(score, o_ref):
    # numerically-stable softmax along the station (last) axis
    m = jnp.max(score, axis=-1, keepdims=True)
    e = jnp.exp(score - m)
    denom = jnp.sum(e, axis=-1, keepdims=True)
    inv = pl.reciprocal(denom, approx=True)       # EUP vrcp (separate slot)
    inv = inv * (2.0 - denom * inv)               # one Newton step -> ~f32 exact
    o_ref[...] = (e * inv).astype(o_ref.dtype)


def _dot_attn_kernel(q_ref, k_ref, o_ref, *, inv_sqrt_d):
    # q_ref: (TB, D)   k_ref: (TB, N, D)   o_ref: (TB, N)
    q = q_ref[...].astype(jnp.float32)
    k = k_ref[...].astype(jnp.float32)
    # VPU multiply + lane reduce instead of a degenerate M=1 MXU matmul.
    score = jnp.sum(q[:, None, :] * k, axis=-1) * inv_sqrt_d
    _finish_softmax(score, o_ref)


def _dot_attn_kernel_masked(q_ref, k_ref, m_ref, o_ref, *, inv_sqrt_d):
    # m_ref: (TB, N) int32; 0 -> masked out (score = -inf), matching masked_fill.
    q = q_ref[...].astype(jnp.float32)
    k = k_ref[...].astype(jnp.float32)
    score = jnp.sum(q[:, None, :] * k, axis=-1) * inv_sqrt_d
    score = jnp.where(m_ref[...] == 0, -jnp.inf, score)
    _finish_softmax(score, o_ref)


def dot_product_attention(key, query, mask=None, *, block_b=None):
    """key: [B, N, D], query: [B, D] -> attention weights [B, N] (f32)."""
    B, N, D = key.shape
    assert query.shape == (B, D), (query.shape, (B, D))

    # --- batch tile: aim for ~0.5 MiB of key bytes per grid step, multiple of
    #     8 (sublane), capped so double-buffered tiles stay far below the
    #     scoped-VMEM default on every generation (v5e 16 MiB is the tightest).
    if block_b is None:
        key_row_bytes = N * D * jnp.dtype(key.dtype).itemsize
        tb = (512 * 1024) // max(1, key_row_bytes)
        tb = max(8, min(tb, 1024, _round_up(B, 8)))
    else:
        tb = int(block_b)
    tb = _round_up(tb, 8)

    Bp = _round_up(B, tb)
    if Bp != B:
        pad = Bp - B
        key = jnp.pad(key, ((0, pad), (0, 0), (0, 0)))
        query = jnp.pad(query, ((0, pad), (0, 0)))

    grid = (Bp // tb,)
    inv_sqrt_d = 1.0 / math.sqrt(float(D))

    q_spec = pl.BlockSpec((tb, D), lambda i: (i, 0))
    k_spec = pl.BlockSpec((tb, N, D), lambda i: (i, 0, 0))
    o_spec = pl.BlockSpec((tb, N), lambda i: (i, 0))
    out_shape = jax.ShapeDtypeStruct((Bp, N), jnp.float32)
    cparams = pltpu.CompilerParams(dimension_semantics=("parallel",))

    if mask is None:
        out = pl.pallas_call(
            functools.partial(_dot_attn_kernel, inv_sqrt_d=inv_sqrt_d),
            out_shape=out_shape,
            grid=grid,
            in_specs=[q_spec, k_spec],
            out_specs=o_spec,
            compiler_params=cparams,
        )(query, key)
    else:
        # mirror PyTorch's mask.squeeze(); accept [B,1,N] / [B,N] / [N]
        m2 = jnp.broadcast_to(jnp.squeeze(mask), (B, N)).astype(jnp.int32)
        if Bp != B:
            m2 = jnp.pad(m2, ((0, Bp - B), (0, 0)), constant_values=1)
        m_spec = pl.BlockSpec((tb, N), lambda i: (i, 0))
        out = pl.pallas_call(
            functools.partial(_dot_attn_kernel_masked, inv_sqrt_d=inv_sqrt_d),
            out_shape=out_shape,
            grid=grid,
            in_specs=[q_spec, k_spec, m_spec],
            out_specs=o_spec,
            compiler_params=cparams,
        )(query, key, m2)

    return out[:B]


def _reference(key, query, mask=None):
    d = key.shape[-1]
    score = jnp.einsum("bd,bnd->bn", query, key) / jnp.sqrt(jnp.float32(d))
    if mask is not None:
        m = jnp.broadcast_to(jnp.squeeze(mask), score.shape)
        score = jnp.where(m == 0, -jnp.inf, score)
    return jax.nn.softmax(score, axis=-1)


if __name__ == "__main__":
    rng = jax.random.PRNGKey(0)
    k_rng, q_rng, k2_rng, q2_rng = jax.random.split(rng, 4)

    # batch=1, n_station=8, d_dim=32 (matches the module's documented shapes)
    key1 = jax.random.normal(k_rng, (1, 8, 32), dtype=jnp.float32)
    qry1 = jax.random.normal(q_rng, (1, 32), dtype=jnp.float32)

    attn1 = dot_product_attention(key1, qry1)
    jax.block_until_ready(attn1)
    ref1 = _reference(key1, qry1)
    assert attn1.shape == (1, 8)
    assert jnp.allclose(attn1, ref1, atol=1e-5, rtol=1e-5)
    assert jnp.allclose(jnp.sum(attn1, axis=-1), 1.0, atol=1e-5)

    # masked path (mask [1, 1, 8]; at least one station left unmasked)
    mask1 = jnp.array([[[1, 0, 1, 1, 0, 1, 0, 1]]], dtype=jnp.int32)
    attn1m = dot_product_attention(key1, qry1, mask=mask1)
    jax.block_until_ready(attn1m)
    ref1m = _reference(key1, qry1, mask=mask1)
    assert jnp.allclose(attn1m, ref1m, atol=1e-5, rtol=1e-5)

    # ragged batch: exercises zero-padding + a multi-step "parallel" grid
    key2 = jax.random.normal(k2_rng, (13, 8, 32), dtype=jnp.float32)
    qry2 = jax.random.normal(q2_rng, (13, 32), dtype=jnp.float32)
    attn2 = dot_product_attention(key2, qry2, block_b=8)
    jax.block_until_ready(attn2)
    ref2 = _reference(key2, qry2)
    assert attn2.shape == (13, 8)
    assert jnp.allclose(attn2, ref2, atol=1e-5, rtol=1e-5)

    print("KERNEL_OK")
</pallas_src>

<mosaic_0001>
module attributes {stable_mosaic.version = 11 : i64} {
  func.func @_dot_attn_kernel(%arg0: i32, %arg1: memref<8x32xf32, #tpu.memory_space<vmem>>, %arg2: memref<8x8x32xf32, #tpu.memory_space<vmem>>, %arg3: memref<8x8xf32, #tpu.memory_space<vmem>>) attributes {dimension_semantics = [#tpu.dimension_semantics<parallel>], iteration_bounds = array<i64: 1>, scalar_prefetch = 0 : i64, scratch_operands = 0 : i64, tpu.core_type = #tpu.core_type<tc>, window_params = [{transform_indices = @transform_0, window_bounds = array<i64: 8, 32>}, {transform_indices = @transform_1, window_bounds = array<i64: 8, 8, 32>}, {transform_indices = @transform_2, window_bounds = array<i64: 8, 8>}]} {
    %c0 = arith.constant 0 : index
    %c0_0 = arith.constant 0 : index
    %0 = vector.load %arg1[%c0, %c0_0] : memref<8x32xf32, #tpu.memory_space<vmem>>, vector<8x32xf32>
    %c0_1 = arith.constant 0 : index
    %c0_2 = arith.constant 0 : index
    %c0_3 = arith.constant 0 : index
    %1 = vector.load %arg2[%c0_1, %c0_2, %c0_3] : memref<8x8x32xf32, #tpu.memory_space<vmem>>, vector<8x8x32xf32>
    %2 = vector.shape_cast %0 : vector<8x32xf32> to vector<8x1x32xf32>
    %3 = vector.broadcast %2 : vector<8x1x32xf32> to vector<8x8x32xf32>
    %4 = arith.mulf %3, %1 : vector<8x8x32xf32>
    %cst = arith.constant dense<0.000000e+00> : vector<8x8xf32>
    %5 = vector.multi_reduction <add>, %4, %cst [2] : vector<8x8x32xf32> to vector<8x8xf32>
    %cst_4 = arith.constant 0.176776692 : f32
    %6 = vector.broadcast %cst_4 : f32 to vector<8x8xf32>
    %7 = arith.mulf %5, %6 : vector<8x8xf32>
    %cst_5 = arith.constant dense<0xFF800000> : vector<8xf32>
    %8 = vector.multi_reduction <maximumf>, %7, %cst_5 [1] : vector<8x8xf32> to vector<8xf32>
    %9 = vector.shape_cast %8 : vector<8xf32> to vector<8x1xf32>
    %10 = vector.broadcast %9 : vector<8x1xf32> to vector<8x8xf32>
    %11 = arith.subf %7, %10 : vector<8x8xf32>
    %12 = math.exp %11 : vector<8x8xf32>
    %cst_6 = arith.constant dense<0.000000e+00> : vector<8xf32>
    %13 = vector.multi_reduction <add>, %12, %cst_6 [1] : vector<8x8xf32> to vector<8xf32>
    %14 = vector.shape_cast %13 : vector<8xf32> to vector<8x1xf32>
    %15 = tpu.reciprocal %14 {approx = true} : vector<8x1xf32> -> vector<8x1xf32>
    %16 = arith.mulf %14, %15 : vector<8x1xf32>
    %cst_7 = arith.constant 2.000000e+00 : f32
    %17 = vector.broadcast %cst_7 : f32 to vector<8x1xf32>
    %18 = arith.subf %17, %16 : vector<8x1xf32>
    %19 = arith.mulf %15, %18 : vector<8x1xf32>
    %20 = vector.broadcast %19 : vector<8x1xf32> to vector<8x8xf32>
    %21 = arith.mulf %12, %20 : vector<8x8xf32>
    %c0_8 = arith.constant 0 : index
    %c0_9 = arith.constant 0 : index
    %22 = vector.load %arg3[%c0_8, %c0_9] : memref<8x8xf32, #tpu.memory_space<vmem>>, vector<8x8xf32>
    tpu.vector_store %arg3[%c0_8, %c0_9], %21 {strides = array<i32>} : memref<8x8xf32, #tpu.memory_space<vmem>>, vector<8x8xf32>,
    return
  }
  func.func @transform_0(%arg0: i32) -> (i32, i32) {
    %c0_i32 = arith.constant 0 : i32
    %c0_i32_0 = arith.constant 0 : i32
    return %arg0, %c0_i32 : i32, i32
  }
  func.func @transform_1(%arg0: i32) -> (i32, i32, i32) {
    %c0_i32 = arith.constant 0 : i32
    %c0_i32_0 = arith.constant 0 : i32
    %c0_i32_1 = arith.constant 0 : i32
    return %arg0, %c0_i32, %c0_i32_0 : i32, i32, i32
  }
  func.func @transform_2(%arg0: i32) -> (i32, i32) {
    %c0_i32 = arith.constant 0 : i32
    %c0_i32_0 = arith.constant 0 : i32
    return %arg0, %c0_i32 : i32, i32
  }
}

</mosaic_0001>

<llo_original>
// kernel: tpu_custom_call.1
$region0: #{tpu_custom_call.1}
  #allocation0 [shape = 'u32[]', space=smem, size = 0x4, offset = 0x4, fixed_abs, tag = 'smem constant byte address 0x4 - core index']
  #allocation1 [shape = 'u32[144,128]{1,0:T(1,128)}', space=vmem, size = 0x12000, scoped, tag = 'internal scratch']
  %s0 = inlined_call_operand.hbm [shape: f32[8,32], index: 0, kind: input, shape index: {}]
  %s1 = inlined_call_operand.hbm [shape: f32[8,8,32], index: 1, kind: input, shape index: {}]
  %s2 = inlined_call_operand.hbm [shape: f32[8,8], index: 2, kind: output, shape index: {}]
  %s3 = sld [smem:[#allocation0]]
  $region26: #{tpu_custom_call.1} parent=0
    _
  %s5 = ssub.s32 1, %s3
  %s6 = scalar_select 0, %s5, %s3
  $region1: #{tpu_custom_call.1} parent=0
    #allocation2 [shape = 'u8[4096]{0}', space=vmem, size = 0x1000, scoped, tag = 'input window, operand 0, single buffered']
    #allocation3 [shape = 's32[1]{0}', space=sflag, size = 0x4, scoped, tag = 'scoped memory for tpu_custom_call.1']
    #allocation4 [shape = 's32[1]{0}', space=sflag, size = 0x4, scoped, tag = 'scoped memory for tpu_custom_call.1']
    #allocation5 [shape = 'u8[32768]{0}', space=vmem, size = 0x8000, scoped, tag = 'input window, operand 1, single buffered']
    #allocation6 [shape = 's32[1]{0}', space=sflag, size = 0x4, scoped, tag = 'scoped memory for tpu_custom_call.1']
    #allocation7 [shape = 'u8[4096]{0}', space=vmem, size = 0x1000, scoped, tag = 'output window, operand 0, single buffered']
    %7 = vsyncpa [#allocation3], 0
    %8 = vsyncpa [#allocation6], 0
    %9 = vsyncpa [#allocation4], 0
    // Predicated region
    $region2: #{tpu_custom_call.1} parent=1 // pred_check
      _
    $region3: #{tpu_custom_call.1} parent=1 // pred_check_branch
      %11 = sbr.rel (0) target = $region5
    $region4: #{tpu_custom_call.1} parent=1 // pred_region
      %s13 = ssub.s32 128, 128
      %14 = vsyncadd [#allocation3], %s13
      %s16 = sshll.u32 [#allocation2], 4
      %s17 = int_to_ptr.vmem [resolvable:$true] %s16
      %19 = dma.hbm_to_vmem [thread:$0]  %s0, 128, %s17, [#allocation3]
    $region5: #{tpu_custom_call.1} parent=1 // pred_fallthru
      _
    // Predicated region
    $region6: #{tpu_custom_call.1} parent=1 // pred_check
      _
    $region7: #{tpu_custom_call.1} parent=1 // pred_check_branch
      %21 = sbr.rel (0) target = $region9
    $region8: #{tpu_custom_call.1} parent=1 // pred_region
      %s23 = ssub.s32 1024, 1024
      %24 = vsyncadd [#allocation6], %s23
      %s25 = sshll.u32 [#allocation5], 4
      %s26 = int_to_ptr.vmem [resolvable:$true] %s25
      %31 = dma.hbm_to_vmem [thread:$0]  %s1, 1024, %s26, [#allocation6], 128, 128, 8
    $region9: #{tpu_custom_call.1} parent=1 // pred_fallthru
      _
    // Predicated region
    $region10: #{tpu_custom_call.1} parent=1 // pred_check
      _
    $region11: #{tpu_custom_call.1} parent=1 // pred_check_branch
      %33 = sbr.rel (0) target = $region13
    $region12: #{tpu_custom_call.1} parent=1 // pred_region
      %34 = dma.done [#allocation3], 128
    $region13: #{tpu_custom_call.1} parent=1 // pred_fallthru
      _
    // Predicated region
    $region14: #{tpu_custom_call.1} parent=1 // pred_check
      _
    $region15: #{tpu_custom_call.1} parent=1 // pred_check_branch
      %36 = sbr.rel (0) target = $region17
    $region16: #{tpu_custom_call.1} parent=1 // pred_region
      %37 = dma.done [#allocation6], 1024
    $region17: #{tpu_custom_call.1} parent=1 // pred_fallthru
      _
    %v38 = vld [vmem:[#allocation2] sm:$0xff]
    %v39 = vld [vmem:[#allocation5] sm:$0xff]
    %v40 = vld [vmem:[#allocation5 + $0x8] sm:$0xff]
    %v41 = vld [vmem:[#allocation5 + $0x10] sm:$0xff]
    %v42 = vld [vmem:[#allocation5 + $0x18] sm:$0xff]
    %v43 = vld [vmem:[#allocation5 + $0x20] sm:$0xff]
    %v44 = vld [vmem:[#allocation5 + $0x28] sm:$0xff]
    %v45 = vld [vmem:[#allocation5 + $0x30] sm:$0xff]
    %v46 = vld [vmem:[#allocation5 + $0x38] sm:$0xff]
    %v48 = vcombine.high %v38, %v38
    %v50 = vunpack.c.l.s4 1966171168
    %v51 = vunpack.c.0.s8 %v50
    %v52 = vlaneseq
    %v53 = vshrl.u32 %v52, 7
    %v54 = vsub.s32 %v51, %v53
    %v55 = vrot.slane %v38, %v54
    %v57 = vunpack.c.l.s4 1966171168
    %v58 = vunpack.c.0.s8 %v57
    %v59 = vlaneseq
    %v60 = vshrl.u32 %v59, 7
    %v61 = vsub.s32 %v58, %v60
    %v62 = vrot.slane %v48, %v61
    %v63 = vcombine.high %v55, %v55
    %v64 = vcombine.high %v62, %v62
    %v66 = vunpack.c.l.s4 1966171168
    %v67 = vunpack.c.0.s8 %v66
    %v68 = vlaneseq
    %v69 = vshrl.u32 %v68, 7
    %v70 = vsub.s32 %v67, %v69
    %v71 = vrot.slane %v55, %v70
    %v73 = vunpack.c.l.s4 1966171168
    %v74 = vunpack.c.0.s8 %v73
    %v75 = vlaneseq
    %v76 = vshrl.u32 %v75, 7
    %v77 = vsub.s32 %v74, %v76
    %v78 = vrot.slane %v62, %v77
    %v80 = vunpack.c.l.s4 1966171168
    %v81 = vunpack.c.0.s8 %v80
    %v82 = vlaneseq
    %v83 = vshrl.u32 %v82, 7
    %v84 = vsub.s32 %v81, %v83
    %v85 = vrot.slane %v63, %v84
    %v87 = vunpack.c.l.s4 1966171168
    %v88 = vunpack.c.0.s8 %v87
    %v89 = vlaneseq
    %v90 = vshrl.u32 %v89, 7
    %v91 = vsub.s32 %v88, %v90
    %v92 = vrot.slane %v64, %v91
    %v93 = vcombine.high %v71, %v71
    %v94 = vcombine.high %v78, %v78
    %v95 = vcombine.high %v85, %v85
    %v96 = vcombine.high %v92, %v92
    %v97 = vlaneseq
    %v98 = vshrl.u32 %v97, 7
    %v99 = vsub.s32 0, %v98
    %v100 = vrot.slane %v71, %v99
    %v101 = vlaneseq
    %v102 = vshrl.u32 %v101, 7
    %v103 = vsub.s32 0, %v102
    %v104 = vrot.slane %v85, %v103
    %v105 = vlaneseq
    %v106 = vshrl.u32 %v105, 7
    %v107 = vsub.s32 0, %v106
    %v108 = vrot.slane %v93, %v107
    %v109 = vlaneseq
    %v110 = vshrl.u32 %v109, 7
    %v111 = vsub.s32 0, %v110
    %v112 = vrot.slane %v95, %v111
    %v113 = vlaneseq
    %v114 = vshrl.u32 %v113, 7
    %v115 = vsub.s32 0, %v114
    %v116 = vrot.slane %v78, %v115
    %v117 = vlaneseq
    %v118 = vshrl.u32 %v117, 7
    %v119 = vsub.s32 0, %v118
    %v120 = vrot.slane %v92, %v119
    %v121 = vlaneseq
    %v122 = vshrl.u32 %v121, 7
    %v123 = vsub.s32 0, %v122
    %v124 = vrot.slane %v94, %v123
    %v125 = vlaneseq
    %v126 = vshrl.u32 %v125, 7
    %v127 = vsub.s32 0, %v126
    %v128 = vrot.slane %v96, %v127
    %v137 = vmul.f32 %v100, %v39
    %v138 = vmul.f32 %v104, %v40
    %v139 = vmul.f32 %v108, %v41
    %v140 = vmul.f32 %v112, %v42
    %v141 = vmul.f32 %v116, %v43
    %v142 = vmul.f32 %v120, %v44
    %v143 = vmul.f32 %v124, %v45
    %v144 = vmul.f32 %v128, %v46
    %vm145 = vcmask 261120
    %v146 = vsel %vm145, %v137, 0.0
    %147 = vadd.xlane.f32.xlu0 %v146
    %v148 = vpop.xlane.xlu0 %147
    %v149 = vsel %vm145, %v138, 0.0
    %150 = vadd.xlane.f32.xlu0 %v149
    %v151 = vpop.xlane.xlu0 %150
    %v152 = vsel %vm145, %v139, 0.0
    %153 = vadd.xlane.f32.xlu0 %v152
    %v154 = vpop.xlane.xlu0 %153
    %v155 = vsel %vm145, %v140, 0.0
    %156 = vadd.xlane.f32.xlu0 %v155
    %v157 = vpop.xlane.xlu0 %156
    %v158 = vsel %vm145, %v141, 0.0
    %159 = vadd.xlane.f32.xlu0 %v158
    %v160 = vpop.xlane.xlu0 %159
    %v161 = vsel %vm145, %v142, 0.0
    %162 = vadd.xlane.f32.xlu0 %v161
    %v163 = vpop.xlane.xlu0 %162
    %v164 = vsel %vm145, %v143, 0.0
    %165 = vadd.xlane.f32.xlu0 %v164
    %v166 = vpop.xlane.xlu0 %165
    %v167 = vsel %vm145, %v144, 0.0
    %168 = vadd.xlane.f32.xlu0 %v167
    %v169 = vpop.xlane.xlu0 %168
    %v170 = vmul.f32 %v148, 0.17677669
    %v171 = vmul.f32 %v151, 0.17677669
    %v172 = vmul.f32 %v154, 0.17677669
    %v173 = vmul.f32 %v157, 0.17677669
    %v174 = vmul.f32 %v160, 0.17677669
    %v175 = vmul.f32 %v163, 0.17677669
    %v176 = vmul.f32 %v166, 0.17677669
    %v177 = vmul.f32 %v169, 0.17677669
    %v186 = vlaneseq
    %v187 = vand.u32 %v186, 127
    %v188 = vlaneseq
    %v189 = vshrl.u32 %v188, 7
    %v190 = vsub.s32 %v187, %v189
    %v191 = vrot.slane %v170, %v190
    %v192 = vlaneseq
    %v193 = vshrl.u32 %v192, 7
    %v194 = vsub.s32 %v187, %v193
    %v195 = vrot.slane %v171, %v194
    %v196 = vlaneseq
    %v197 = vshrl.u32 %v196, 7
    %v198 = vsub.s32 %v187, %v197
    %v199 = vrot.slane %v172, %v198
    %v200 = vlaneseq
    %v201 = vshrl.u32 %v200, 7
    %v202 = vsub.s32 %v187, %v201
    %v203 = vrot.slane %v173, %v202
    %v204 = vlaneseq
    %v205 = vshrl.u32 %v204, 7
    %v206 = vsub.s32 %v187, %v205
    %v207 = vrot.slane %v174, %v206
    %v208 = vlaneseq
    %v209 = vshrl.u32 %v208, 7
    %v210 = vsub.s32 %v187, %v209
    %v211 = vrot.slane %v175, %v210
    %v212 = vlaneseq
    %v213 = vshrl.u32 %v212, 7
    %v214 = vsub.s32 %v187, %v213
    %v215 = vrot.slane %v176, %v214
    %v216 = vlaneseq
    %v217 = vshrl.u32 %v216, 7
    %v218 = vsub.s32 %v187, %v217
    %v219 = vrot.slane %v177, %v218
    %vm220 = vcmask 1041409
    %v221 = vsel %vm220, %v195, %v191
    %vm222 = vcmask 1042434
    %v223 = vsel %vm222, %v199, %v221
    %vm224 = vcmask 1043459
    %v225 = vsel %vm224, %v203, %v223
    %vm226 = vcmask 1044484
    %v227 = vsel %vm226, %v207, %v225
    %vm228 = vcmask 1045509
    %v229 = vsel %vm228, %v211, %v227
    %vm230 = vcmask 1046534
    %v231 = vsel %vm230, %v215, %v229
    %vm232 = vcmask 1047559
    %v233 = vsel %vm232, %v219, %v231
    %vm235 = vcmask 64512
    %v236 = vsel %vm235, %v233, -inf
    %237 = vmax.xlane.f32.xlu0 %v236
    %v238 = vpop.xlane.xlu0 %237
    %v240 = vlaneseq
    %v241 = vshrl.u32 %v240, 7
    %v242 = vsub.s32 0, %v241
    %v243 = vrot.slane %v238, %v242
    %v244 = vlaneseq
    %v245 = vshrl.u32 %v244, 7
    %v246 = vsub.s32 1, %v245
    %v247 = vrot.slane %v238, %v246
    %v248 = vlaneseq
    %v249 = vshrl.u32 %v248, 7
    %v250 = vsub.s32 2, %v249
    %v251 = vrot.slane %v238, %v250
    %v252 = vlaneseq
    %v253 = vshrl.u32 %v252, 7
    %v254 = vsub.s32 3, %v253
    %v255 = vrot.slane %v238, %v254
    %v256 = vlaneseq
    %v257 = vshrl.u32 %v256, 7
    %v258 = vsub.s32 4, %v257
    %v259 = vrot.slane %v238, %v258
    %v260 = vlaneseq
    %v261 = vshrl.u32 %v260, 7
    %v262 = vsub.s32 5, %v261
    %v263 = vrot.slane %v238, %v262
    %v264 = vlaneseq
    %v265 = vshrl.u32 %v264, 7
    %v266 = vsub.s32 6, %v265
    %v267 = vrot.slane %v238, %v266
    %v268 = vlaneseq
    %v269 = vshrl.u32 %v268, 7
    %v270 = vsub.s32 7, %v269
    %v271 = vrot.slane %v238, %v270
    %v280 = vsub.f32 %v170, %v243
    %v281 = vsub.f32 %v171, %v247
    %v282 = vsub.f32 %v172, %v251
    %v283 = vsub.f32 %v173, %v255
    %v284 = vsub.f32 %v174, %v259
    %v285 = vsub.f32 %v175, %v263
    %v286 = vsub.f32 %v176, %v267
    %v287 = vsub.f32 %v177, %v271
    %v288 = vmul.f32 %v280, 1.442695
    %v289 = vpow.pop %v288
    %v290 = vmul.f32 %v281, 1.442695
    %v291 = vpow.pop %v290
    %v292 = vmul.f32 %v282, 1.442695
    %v293 = vpow.pop %v292
    %v294 = vmul.f32 %v283, 1.442695
    %v295 = vpow.pop %v294
    %v296 = vmul.f32 %v284, 1.442695
    %v297 = vpow.pop %v296
    %v298 = vmul.f32 %v285, 1.442695
    %v299 = vpow.pop %v298
    %v300 = vmul.f32 %v286, 1.442695
    %v301 = vpow.pop %v300
    %v302 = vmul.f32 %v287, 1.442695
    %v303 = vpow.pop %v302
    %312 = vset.pattern.permute.xlu0 0
    %313 = vperm.xlu0 %312, %v289
    %v314 = vpop.permute.xlu0 %313
    %315 = vset.pattern.permute.xlu0 0
    %316 = vperm.xlu0 %315, %v291
    %v317 = vpop.permute.xlu0 %316
    %318 = vset.pattern.permute.xlu0 0
    %319 = vperm.xlu0 %318, %v293
    %v320 = vpop.permute.xlu0 %319
    %321 = vset.pattern.permute.xlu0 0
    %322 = vperm.xlu0 %321, %v295
    %v323 = vpop.permute.xlu0 %322
    %324 = vset.pattern.permute.xlu0 0
    %325 = vperm.xlu0 %324, %v297
    %v326 = vpop.permute.xlu0 %325
    %327 = vset.pattern.permute.xlu0 0
    %328 = vperm.xlu0 %327, %v299
    %v329 = vpop.permute.xlu0 %328
    %330 = vset.pattern.permute.xlu0 0
    %331 = vperm.xlu0 %330, %v301
    %v332 = vpop.permute.xlu0 %331
    %333 = vset.pattern.permute.xlu0 0
    %334 = vperm.xlu0 %333, %v303
    %v335 = vpop.permute.xlu0 %334
    %v336 = vlaneseq
    %v337 = vshrl.u32 %v336, 7
    %v338 = vsub.s32 %v187, %v337
    %v339 = vrot.slane %v314, %v338
    %v340 = vlaneseq
    %v341 = vshrl.u32 %v340, 7
    %v342 = vsub.s32 %v187, %v341
    %v343 = vrot.slane %v317, %v342
    %v344 = vlaneseq
    %v345 = vshrl.u32 %v344, 7
    %v346 = vsub.s32 %v187, %v345
    %v347 = vrot.slane %v320, %v346
    %v348 = vlaneseq
    %v349 = vshrl.u32 %v348, 7
    %v350 = vsub.s32 %v187, %v349
    %v351 = vrot.slane %v323, %v350
    %v352 = vlaneseq
    %v353 = vshrl.u32 %v352, 7
    %v354 = vsub.s32 %v187, %v353
    %v355 = vrot.slane %v326, %v354
    %v356 = vlaneseq
    %v357 = vshrl.u32 %v356, 7
    %v358 = vsub.s32 %v187, %v357
    %v359 = vrot.slane %v329, %v358
    %v360 = vlaneseq
    %v361 = vshrl.u32 %v360, 7
    %v362 = vsub.s32 %v187, %v361
    %v363 = vrot.slane %v332, %v362
    %v364 = vlaneseq
    %v365 = vshrl.u32 %v364, 7
    %v366 = vsub.s32 %v187, %v365
    %v367 = vrot.slane %v335, %v366
    %v368 = vsel %vm220, %v343, %v339
    %v369 = vsel %vm222, %v347, %v368
    %v370 = vsel %vm224, %v351, %v369
    %v371 = vsel %vm226, %v355, %v370
    %v372 = vsel %vm228, %v359, %v371
    %v373 = vsel %vm230, %v363, %v372
    %v374 = vsel %vm232, %v367, %v373
    %v376 = vsel %vm235, %v374, 0.0
    %377 = vadd.xlane.f32.xlu0 %v376
    %v378 = vpop.xlane.xlu0 %377
    %v379 = vrcp.pop %v378
    %v380 = vmul.f32 %v378, %v379
    %v381 = vsub.f32 2.0, %v380
    %v382 = vmul.f32 %v379, %v381
    %v384 = vlaneseq
    %v385 = vshrl.u32 %v384, 7
    %v386 = vsub.s32 0, %v385
    %v387 = vrot.slane %v382, %v386
    %v388 = vlaneseq
    %v389 = vshrl.u32 %v388, 7
    %v390 = vsub.s32 1, %v389
    %v391 = vrot.slane %v382, %v390
    %v392 = vlaneseq
    %v393 = vshrl.u32 %v392, 7
    %v394 = vsub.s32 2, %v393
    %v395 = vrot.slane %v382, %v394
    %v396 = vlaneseq
    %v397 = vshrl.u32 %v396, 7
    %v398 = vsub.s32 3, %v397
    %v399 = vrot.slane %v382, %v398
    %v400 = vlaneseq
    %v401 = vshrl.u32 %v400, 7
    %v402 = vsub.s32 4, %v401
    %v403 = vrot.slane %v382, %v402
    %v404 = vlaneseq
    %v405 = vshrl.u32 %v404, 7
    %v406 = vsub.s32 5, %v405
    %v407 = vrot.slane %v382, %v406
    %v408 = vlaneseq
    %v409 = vshrl.u32 %v408, 7
    %v410 = vsub.s32 6, %v409
    %v411 = vrot.slane %v382, %v410
    %v412 = vlaneseq
    %v413 = vshrl.u32 %v412, 7
    %v414 = vsub.s32 7, %v413
    %v415 = vrot.slane %v382, %v414
    %v424 = vmul.f32 %v289, %v387
    %v425 = vmul.f32 %v291, %v391
    %v426 = vmul.f32 %v293, %v395
    %v427 = vmul.f32 %v295, %v399
    %v428 = vmul.f32 %v297, %v403
    %v429 = vmul.f32 %v299, %v407
    %v430 = vmul.f32 %v301, %v411
    %v431 = vmul.f32 %v303, %v415
    %440 = vset.pattern.permute.xlu0 0
    %441 = vperm.xlu0 %440, %v424
    %v442 = vpop.permute.xlu0 %441
    %443 = vset.pattern.permute.xlu0 0
    %444 = vperm.xlu0 %443, %v425
    %v445 = vpop.permute.xlu0 %444
    %446 = vset.pattern.permute.xlu0 0
    %447 = vperm.xlu0 %446, %v426
    %v448 = vpop.permute.xlu0 %447
    %449 = vset.pattern.permute.xlu0 0
    %450 = vperm.xlu0 %449, %v427
    %v451 = vpop.permute.xlu0 %450
    %452 = vset.pattern.permute.xlu0 0
    %453 = vperm.xlu0 %452, %v428
    %v454 = vpop.permute.xlu0 %453
    %455 = vset.pattern.permute.xlu0 0
    %456 = vperm.xlu0 %455, %v429
    %v457 = vpop.permute.xlu0 %456
    %458 = vset.pattern.permute.xlu0 0
    %459 = vperm.xlu0 %458, %v430
    %v460 = vpop.permute.xlu0 %459
    %461 = vset.pattern.permute.xlu0 0
    %462 = vperm.xlu0 %461, %v431
    %v463 = vpop.permute.xlu0 %462
    %v464 = vlaneseq
    %v465 = vshrl.u32 %v464, 7
    %v466 = vsub.s32 %v187, %v465
    %v467 = vrot.slane %v442, %v466
    %v468 = vlaneseq
    %v469 = vshrl.u32 %v468, 7
    %v470 = vsub.s32 %v187, %v469
    %v471 = vrot.slane %v445, %v470
    %v472 = vlaneseq
    %v473 = vshrl.u32 %v472, 7
    %v474 = vsub.s32 %v187, %v473
    %v475 = vrot.slane %v448, %v474
    %v476 = vlaneseq
    %v477 = vshrl.u32 %v476, 7
    %v478 = vsub.s32 %v187, %v477
    %v479 = vrot.slane %v451, %v478
    %v480 = vlaneseq
    %v481 = vshrl.u32 %v480, 7
    %v482 = vsub.s32 %v187, %v481
    %v483 = vrot.slane %v454, %v482
    %v484 = vlaneseq
    %v485 = vshrl.u32 %v484, 7
    %v486 = vsub.s32 %v187, %v485
    %v487 = vrot.slane %v457, %v486
    %v488 = vlaneseq
    %v489 = vshrl.u32 %v488, 7
    %v490 = vsub.s32 %v187, %v489
    %v491 = vrot.slane %v460, %v490
    %v492 = vlaneseq
    %v493 = vshrl.u32 %v492, 7
    %v494 = vsub.s32 %v187, %v493
    %v495 = vrot.slane %v463, %v494
    %v496 = vsel %vm220, %v471, %v467
    %v497 = vsel %vm222, %v475, %v496
    %v498 = vsel %vm224, %v479, %v497
    %v499 = vsel %vm226, %v483, %v498
    %v500 = vsel %vm228, %v487, %v499
    %v501 = vsel %vm230, %v491, %v500
    %v502 = vsel %vm232, %v495, %v501
    %504 = vst.msk [vmem:[#allocation7] sm:$0xff] %vm235, %v502
    // Predicated region
    $region18: #{tpu_custom_call.1} parent=1 // pred_check
      _
    $region19: #{tpu_custom_call.1} parent=1 // pred_check_branch
      %506 = sbr.rel (0) target = $region21
    $region20: #{tpu_custom_call.1} parent=1 // pred_region
      %s508 = ssub.s32 128, 128
      %509 = vsyncadd [#allocation4], %s508
      %s511 = sshll.u32 [#allocation7], 4
      %s512 = int_to_ptr.vmem [resolvable:$true] %s511
      %514 = dma.vmem_to_hbm [thread:$0]  %s512, 128, %s2, [#allocation4]
    $region21: #{tpu_custom_call.1} parent=1 // pred_fallthru
      _
    // Predicated region
    $region22: #{tpu_custom_call.1} parent=1 // pred_check
      _
    $region23: #{tpu_custom_call.1} parent=1 // pred_check_branch
      %516 = sbr.rel (0) target = $region25
    $region24: #{tpu_custom_call.1} parent=1 // pred_region
      %517 = dma.done [#allocation4], 128
    $region25: #{tpu_custom_call.1} parent=1 // pred_fallthru
      _
    %518 = vsyncpa [#allocation3], 1
    %519 = vsyncpa [#allocation6], 1
    %520 = vsyncpa [#allocation4], 1

</llo_original>
